<compile_context>
chip_gen: v7x
topology: tpu7x:2x2x1
jax: 0.10.0
libtpu: 0.0.40
codegen_flags: <defaults>
</compile_context>

<pallas_src>
import jax
import jax.numpy as jnp
import numpy as np
from jax.experimental import pallas as pl
from jax.experimental.pallas import tpu as pltpu


# --------------------------------- kernels -----------------------------------


def _v_reduce_kernel(v_ref, out_ref):
    # score == softmax over a size-1 axis == 1.0 exactly, so the module output is
    # just sum(v, dim=-2).  Accumulate in f32 regardless of v's storage dtype.
    out_ref[...] = jnp.sum(v_ref[...].astype(jnp.float32), axis=1)


def _score_path_kernel(q_ref, k_ref, v_ref, wf_ref, bf_ref, ws_ref, bs_ref,
                       out_ref, qk_sc):
    BT, N, D = q_ref.shape
    rows = BT * N

    # Stage q,k side-by-side in a bf16 VMEM scratch -> ONE K=2D MXU dot.
    # Leading-dim collapse (BT,N,D)->(BT*N,D) preserves (8,128) tiling; the two
    # lane-half stores are tile-aligned (offsets 0 and D=128).
    qk_sc[:, :D] = q_ref[...].reshape(rows, D).astype(jnp.bfloat16)
    qk_sc[:, D:] = k_ref[...].reshape(rows, D).astype(jnp.bfloat16)

    # Fused query/key transform; bf_ref holds bq + bk (folded host-side).
    # NOTE: A=128 fills only half the 256-wide MXU output on v6e/v7x — irrelevant
    # here (kernel is HBM-bound); would matter only if this became MXU-bound.
    attn = jnp.dot(qk_sc[...], wf_ref[...],
                   preferred_element_type=jnp.float32) + bf_ref[...]

    # attn_score: Tanh -> Dropout(eval: identity) -> Linear(A, 1).
    # Kept in f32 (v5e has no bf16 VPU/EUP); Linear(A,1) as VPU mul + lane reduce,
    # not a 1-lane MXU matmul.
    x = jnp.tanh(attn)
    s = jnp.sum(x * ws_ref[...], axis=-1, keepdims=True) + bs_ref[0, 0]   # (rows, 1)

    # Literal Softmax(dim=-1) over the size-1 axis — exactly 1.0.  Kept only in this
    # fidelity mode; the default fast path removes it (bit-identical result).
    num = jnp.exp(s - jnp.max(s, axis=-1, keepdims=True))
    sm = num / jnp.sum(num, axis=-1, keepdims=True)

    # score * v, then sum over num_queries -> (BT, D) lane-dense store.
    rep = sm.reshape(BT, N, 1) * v_ref[...].astype(jnp.float32)
    out_ref[...] = jnp.sum(rep, axis=1)


# --------------------------------- wrapper -----------------------------------


def _pick_batch_tile(B, per_row_bytes, requested, vmem_budget_bytes=16 << 20):
    """Largest multiple-of-8 divisor of B that (a) is <= `requested`, (b) keeps the
    double-buffered working set under the VMEM budget, and (c) leaves >= 2 grid
    steps when possible so v7x's two TensorCores both get work."""
    assert B % 8 == 0, "batch size must be a multiple of 8"
    cap = min(requested, B, max(8, vmem_budget_bytes // max(per_row_bytes, 1)))
    if B >= 16:
        cap = min(cap, B // 2)          # grid >= 2 -> both v7x TensorCores busy
    bt = 8
    for cand in range(8, int(cap) + 1, 8):
        if B % cand == 0:
            bt = cand
    return bt


def std_attn_forward(q, k, v, params, *, batch_tile=128, keep_score_path=False):
    """StdAttn forward (eval mode).

    keep_score_path=False (default): bit-identical fast path, out = sum(v, dim=-2).
    keep_score_path=True: full literal dataflow (q/k transform, tanh, score, softmax).
    """
    B, N, D = q.shape
    assert k.shape == (B, N, D) and v.shape == (B, N, D)
    A = params["wq_t"].shape[1]
    # The module's `trans_k + trans_q` broadcast add requires bsz == num_queries.
    assert B == N, "StdAttn broadcast add requires bsz == num_queries"

    if not keep_score_path:
        # Fast path: pure v-reduction — no q/k/weight reads, ~3x less HBM traffic.
        per_row = 2 * (N * D * v.dtype.itemsize + D * 4)          # 2 pipeline buffers
        bt = _pick_batch_tile(B, per_row, batch_tile)
        return pl.pallas_call(
            _v_reduce_kernel,
            out_shape=jax.ShapeDtypeStruct((B, D), jnp.float32),
            grid=(B // bt,),
            in_specs=[pl.BlockSpec((bt, N, D), lambda i: (i, 0, 0))],   # v tile, native dtype
            out_specs=pl.BlockSpec((bt, D), lambda i: (i, 0)),          # lane-dense store
            compiler_params=pltpu.CompilerParams(
                dimension_semantics=("parallel",)),
        )(v)

    # ---- fidelity path: full literal dataflow --------------------------------
    # Weights are tiny and grid-resident: fuse [Wq^T ; Wk^T] -> (2D, A) and bq+bk once
    # (in production these would be pre-fused/pre-cast, not rebuilt per call).
    wf = jnp.concatenate([params["wq_t"], params["wk_t"]], axis=0).astype(jnp.bfloat16)
    bf = (params["bq"] + params["bk"]).astype(jnp.float32)        # (1, A)
    ws = params["ws"].astype(jnp.float32)                         # (1, A)
    bs = params["bs"].astype(jnp.float32)                         # (1, 1) scalar in SMEM
    # q, k, v are passed in their native dtypes; the bf16 cast of q/k happens inside
    # the kernel (no extra HBM round trip for a concatenated/cast copy).
    per_row = (2 * (N * D * q.dtype.itemsize + N * D * k.dtype.itemsize
                    + N * D * v.dtype.itemsize + D * 4)           # double-buffered blocks
               + N * 2 * D * 2)                                   # bf16 staging scratch
    bt = _pick_batch_tile(B, per_row, batch_tile)
    return pl.pallas_call(
        _score_path_kernel,
        out_shape=jax.ShapeDtypeStruct((B, D), jnp.float32),
        grid=(B // bt,),
        in_specs=[
            pl.BlockSpec((bt, N, D), lambda i: (i, 0, 0)),        # q tile (native dtype)
            pl.BlockSpec((bt, N, D), lambda i: (i, 0, 0)),        # k tile (native dtype)
            pl.BlockSpec((bt, N, D), lambda i: (i, 0, 0)),        # v tile (native dtype)
            pl.BlockSpec((2 * D, A), lambda i: (0, 0)),           # fused weights (resident)
            pl.BlockSpec((1, A), lambda i: (0, 0)),               # fused bias bq+bk
            pl.BlockSpec((1, A), lambda i: (0, 0)),               # score weights
            pl.BlockSpec(memory_space=pltpu.MemorySpace.SMEM),    # bs scalar in SMEM
        ],
        out_specs=pl.BlockSpec((bt, D), lambda i: (i, 0)),        # lane-dense store
        scratch_shapes=[pltpu.VMEM((bt * N, 2 * D), jnp.bfloat16)],
        compiler_params=pltpu.CompilerParams(
            dimension_semantics=("parallel",)),
    )(q, k, v, wf, bf, ws, bs)


# --------------------------------- reference ---------------------------------


def std_attn_reference(q, k, v, params):
    """Pure-JAX mirror of the PyTorch forward (eval mode), un-fused, f32."""
    B, N, D = q.shape
    A = params["wq_t"].shape[1]
    qr = q.reshape(N, B, D)                      # literal torch reshape
    tq = qr @ params["wq_t"] + params["bq"][0]
    tk = k @ params["wk_t"] + params["bk"][0]
    attn = tk + tq                               # broadcast add (requires B == N)
    x = jnp.tanh(attn).reshape(-1, A)
    s = x @ params["ws"][0][:, None] + params["bs"][0]
    score = jax.nn.softmax(s, axis=-1).reshape(B, N, 1)
    return jnp.sum(score * v, axis=-2)


def init_params(key, input_size, att_dim):
    ks = jax.random.split(key, 6)
    scale = 0.1
    return {
        # nn.Linear(input_size, att_dim).weight is (att_dim, input_size);
        # stored pre-transposed as (input_size, att_dim).
        "wq_t": scale * jax.random.normal(ks[0], (input_size, att_dim), jnp.float32),
        "bq":   scale * jax.random.normal(ks[1], (1, att_dim), jnp.float32),
        "wk_t": scale * jax.random.normal(ks[2], (input_size, att_dim), jnp.float32),
        "bk":   scale * jax.random.normal(ks[3], (1, att_dim), jnp.float32),
        # nn.Linear(att_dim, 1).weight is (1, att_dim) -> kept as (1, att_dim).
        "ws":   scale * jax.random.normal(ks[4], (1, att_dim), jnp.float32),
        "bs":   scale * jax.random.normal(ks[5], (1, 1), jnp.float32),
    }


if __name__ == "__main__":
    # bsz == num_queries (required by the module's broadcast add); embed = att_dim = 128
    # keeps every vreg lane used and output stores unmasked.  batch_tile resolves to 16
    # here -> grid of 2 steps (both v7x TensorCores busy); at production batch sizes it
    # grows to 32-128 rows per step.
    B, N, D, A = 32, 32, 128, 128
    key = jax.random.PRNGKey(0)
    kq, kk, kv, kp = jax.random.split(key, 4)
    q = jax.random.normal(kq, (B, N, D), jnp.float32)
    k = jax.random.normal(kk, (B, N, D), jnp.float32)
    v = jax.random.normal(kv, (B, N, D), jnp.float32)
    params = init_params(kp, D, A)

    ref = jax.block_until_ready(std_attn_reference(q, k, v, params))

    # Default fast path (degenerate size-1 softmax removed -> pure v reduction).
    out = jax.block_until_ready(std_attn_forward(q, k, v, params))
    assert out.shape == (B, D)
    np.testing.assert_allclose(np.asarray(out), np.asarray(ref), rtol=1e-4, atol=1e-4)

    # Fidelity path (full literal dataflow) — same result, score == 1.0 exactly.
    out_full = jax.block_until_ready(
        std_attn_forward(q, k, v, params, keep_score_path=True))
    np.testing.assert_allclose(np.asarray(out_full), np.asarray(ref), rtol=1e-4, atol=1e-4)

    print("KERNEL_OK")
</pallas_src>

<mosaic_0001>
module attributes {stable_mosaic.version = 11 : i64} {
  func.func @_v_reduce_kernel(%arg0: i32, %arg1: memref<16x32x128xf32, #tpu.memory_space<vmem>>, %arg2: memref<16x128xf32, #tpu.memory_space<vmem>>) attributes {dimension_semantics = [#tpu.dimension_semantics<parallel>], iteration_bounds = array<i64: 2>, scalar_prefetch = 0 : i64, scratch_operands = 0 : i64, tpu.core_type = #tpu.core_type<tc>, window_params = [{transform_indices = @transform_0, window_bounds = array<i64: 16, 32, 128>}, {transform_indices = @transform_1, window_bounds = array<i64: 16, 128>}]} {
    %c0 = arith.constant 0 : index
    %c0_0 = arith.constant 0 : index
    %c0_1 = arith.constant 0 : index
    %0 = vector.load %arg1[%c0, %c0_0, %c0_1] : memref<16x32x128xf32, #tpu.memory_space<vmem>>, vector<16x32x128xf32>
    %cst = arith.constant dense<0.000000e+00> : vector<16x128xf32>
    %1 = vector.multi_reduction <add>, %0, %cst [1] : vector<16x32x128xf32> to vector<16x128xf32>
    %c0_2 = arith.constant 0 : index
    %c0_3 = arith.constant 0 : index
    %2 = vector.load %arg2[%c0_2, %c0_3] : memref<16x128xf32, #tpu.memory_space<vmem>>, vector<16x128xf32>
    tpu.vector_store %arg2[%c0_2, %c0_3], %1 {strides = array<i32>} : memref<16x128xf32, #tpu.memory_space<vmem>>, vector<16x128xf32>,
    return
  }
  func.func @transform_0(%arg0: i32) -> (i32, i32, i32) {
    %c0_i32 = arith.constant 0 : i32
    %c0_i32_0 = arith.constant 0 : i32
    %c0_i32_1 = arith.constant 0 : i32
    return %arg0, %c0_i32, %c0_i32_0 : i32, i32, i32
  }
  func.func @transform_1(%arg0: i32) -> (i32, i32) {
    %c0_i32 = arith.constant 0 : i32
    %c0_i32_0 = arith.constant 0 : i32
    return %arg0, %c0_i32 : i32, i32
  }
}

</mosaic_0001>

<llo_original>
// kernel: tpu_custom_call.1
$region0: #{tpu_custom_call.1}
  #allocation0 [shape = 'u32[]', space=smem, size = 0x4, offset = 0x4, fixed_abs, tag = 'smem constant byte address 0x4 - core index']
  #allocation1 [shape = 'u32[144,128]{1,0:T(1,128)}', space=vmem, size = 0x12000, scoped, tag = 'internal scratch']
  %s0 = inlined_call_operand.hbm [shape: f32[32,32,128], index: 0, kind: input, shape index: {}]
  %s1 = inlined_call_operand.hbm [shape: f32[32,128], index: 1, kind: output, shape index: {}]
  %s2 = sld [smem:[#allocation0]]
  $region41: #{tpu_custom_call.1} parent=0
    _
  %s4 = ssub.s32 1, %s2
  %s5 = scalar_select 0, %s4, %s2
  $region1: #{tpu_custom_call.1} parent=0
    #allocation2 [shape = 'u8[524288]{0}', space=vmem, size = 0x80000, scoped, tag = 'input window, operand 0']
    #allocation3 [shape = 's32[2]{0}', space=sflag, size = 0x8, scoped, tag = 'scoped memory for tpu_custom_call.1']
    #allocation4 [shape = 's32[2]{0}', space=sflag, size = 0x8, scoped, tag = 'scoped memory for tpu_custom_call.1']
    #allocation5 [shape = 'u8[16384]{0}', space=vmem, size = 0x4000, scoped, tag = 'output window, operand 0']
    %6 = vsyncpa [#allocation3], 0
    %s7 = scalar_lea.sflag [#allocation3], 1
    %8 = vsyncpa %s7, 0
    %9 = vsyncpa [#allocation4], 0
    %s10 = scalar_lea.sflag [#allocation4], 1
    %11 = vsyncpa %s10, 0
    loop: start=0, step=1, limit=4
    $region2: #{tpu_custom_call.1} parent=1 // loop_pre_header
      _
    $region3: #{tpu_custom_call.1} parent=1 // loop_header
      %s13 = sphi 0, %s17
      %p14 = scmp.ge.s32.totalorder %s13, 4
      %s23 = sphi 0, %s25
      %s26 = sphi 0, %s23
      %s27 = sphi 0, %s26
      %s43 = sphi 0, %s27
      %s49 = sphi 0, %s51
      %s52 = sphi 0, %s49
      %s53 = sphi 0, %s52
      %s69 = sphi 0, %s53
    $region4: #{tpu_custom_call.1} parent=1 // loop_header_branch
      %16 = sbr.rel (%p14) target = $region8
    $region5: #{tpu_custom_call.1} parent=1 // loop_body
      %s18 = ssub.s32 %s13, 1
      %s19 = ssub.s32 %s13, 2
      %s20 = sadd.s32 %s13, 1
      %s21 = ssub.s32 %s13, %s20
      %p22 = scmp.eq.s32.totalorder %s21, 0
      %s24 = sadd.s32 %s23, 1
      %s25 = scalar_select %p22, %s23, %s24
      %p28 = pneg %p22
      %p29 = scmp.eq.s32.totalorder %s13, 1
      %p30 = por %p28, %p29
      %p31 = scmp.ne.s32.totalorder %s23, %s26
      %p32 = scmp.eq.s32.totalorder %s13, 0
      %p33 = por %p31, %p32
      %p34 = scmp.ne.s32.totalorder %s23, %s26
      %p35 = scmp.eq.s32.totalorder %s18, 1
      %p36 = por %p34, %p35
      %p37 = scmp.ne.s32.totalorder %s26, %s27
      %p38 = scmp.eq.s32.totalorder %s18, 0
      %p39 = por %p37, %p38
      %p40 = scmp.ne.s32.totalorder %s26, %s27
      %p41 = scmp.eq.s32.totalorder %s19, 1
      %p42 = por %p40, %p41
      %p44 = scmp.ne.s32.totalorder %s27, %s43
      %p45 = scmp.eq.s32.totalorder %s19, 0
      %p46 = por %p44, %p45
      %s47 = ssub.s32 %s13, %s20
      %p48 = scmp.eq.s32.totalorder %s47, 0
      %s50 = sadd.s32 %s49, 1
      %s51 = scalar_select %p48, %s49, %s50
      %p54 = pneg %p48
      %p55 = scmp.eq.s32.totalorder %s13, 1
      %p56 = por %p54, %p55
      %p57 = scmp.ne.s32.totalorder %s49, %s52
      %p58 = scmp.eq.s32.totalorder %s13, 0
      %p59 = por %p57, %p58
      %p60 = scmp.ne.s32.totalorder %s49, %s52
      %p61 = scmp.eq.s32.totalorder %s18, 1
      %p62 = por %p60, %p61
      %p63 = scmp.ne.s32.totalorder %s52, %s53
      %p64 = scmp.eq.s32.totalorder %s18, 0
      %p65 = por %p63, %p64
      %p66 = scmp.ne.s32.totalorder %s52, %s53
      %p67 = scmp.eq.s32.totalorder %s19, 1
      %p68 = por %p66, %p67
      %p70 = scmp.ne.s32.totalorder %s53, %s69
      %p71 = scmp.eq.s32.totalorder %s19, 0
      %p72 = por %p70, %p71
      %p73 = scmp.le.s32.totalorder 1, %s13
      %p74 = scmp.lt.s32.totalorder %s13, 3
      %p75 = pnand %p73, %p74
      %p76 = pneg %p75
      // Predicated region
      $region9: #{tpu_custom_call.1} parent=5 // pred_check
        _
      $region10: #{tpu_custom_call.1} parent=5 // pred_check_branch
        %78 = sbr.rel (%p75) target = $region12
      $region11: #{tpu_custom_call.1} parent=5 // pred_region
        %s79 = ssub.s32 %s13, 1
      $region12: #{tpu_custom_call.1} parent=5 // pred_fallthru
        _
      %p80 = scmp.lt.s32.totalorder %s13, 2
      // Predicated region
      $region13: #{tpu_custom_call.1} parent=5 // pred_check
        %p81 = pneg %p80
      $region14: #{tpu_custom_call.1} parent=5 // pred_check_branch
        %83 = sbr.rel (%p81) target = $region16
      $region15: #{tpu_custom_call.1} parent=5 // pred_region
        // Predicated region
        $region17: #{tpu_custom_call.1} parent=15 // pred_check
          %p84 = pneg %p33
        $region18: #{tpu_custom_call.1} parent=15 // pred_check_branch
          %86 = sbr.rel (%p84) target = $region20
        $region19: #{tpu_custom_call.1} parent=15 // pred_region
          %s87 = sand.u32 %s23, 1
          %s88 = scalar_lea.sflag [#allocation3], %s87
          %s89 = sand.u32 %s23, 1
          %s90 = smul.addr %s89, 512
          %s91 = scalar_lea.vmem [#allocation2], %s90
          %s92 = smul.u32 16, %s13
          %s94 = ssub.s32 8192, 8192
          %95 = vsyncadd %s88, %s94
          %s96 = smul.addr %s92, 4
          %s97 = smul.addr %s96, 128
          %s98 = scalar_lea.hbm %s0, %s97
          %s99 = sshll.u32 %s91, 4
          %s100 = int_to_ptr.vmem [resolvable:$true] %s99
          %105 = dma.hbm_to_vmem [thread:$0]  %s98, 8192, %s100, %s88, 128, 128, 8
        $region20: #{tpu_custom_call.1} parent=15 // pred_fallthru
          _
      $region16: #{tpu_custom_call.1} parent=5 // pred_fallthru
        _
      %p106 = scmp.le.s32.totalorder 1, %s13
      %p107 = scmp.lt.s32.totalorder %s13, 3
      %p108 = pnand %p106, %p107
      %p109 = pneg %p108
      // Predicated region
      $region21: #{tpu_custom_call.1} parent=5 // pred_check
        _
      $region22: #{tpu_custom_call.1} parent=5 // pred_check_branch
        %111 = sbr.rel (%p108) target = $region24
      $region23: #{tpu_custom_call.1} parent=5 // pred_region
        %s112 = ssub.s32 %s13, 1
        %s113 = sand.u32 %s26, 1
        %s114 = scalar_lea.sflag [#allocation3], %s113
        %s115 = sand.u32 %s26, 1
        %s116 = smul.addr %s115, 512
        %s117 = scalar_lea.vmem [#allocation2], %s116
        // Predicated region
        $region25: #{tpu_custom_call.1} parent=23 // pred_check
          %p118 = pneg %p39
        $region26: #{tpu_custom_call.1} parent=23 // pred_check_branch
          %120 = sbr.rel (%p118) target = $region28
        $region27: #{tpu_custom_call.1} parent=23 // pred_region
          %121 = dma.done %s114, 8192
        $region28: #{tpu_custom_call.1} parent=23 // pred_fallthru
          _
        %s122 = sand.u32 %s26, 1
        %s123 = scalar_lea.sflag [#allocation3], %s122
        %s124 = sand.u32 %s26, 1
        %s125 = smul.addr %s124, 512
        %s126 = scalar_lea.vmem [#allocation2], %s125
        %p127 = pneg %p39
        %p128 = pneg %p36
        %p129 = pneg %p65
        %p130 = pneg %p62
        %s131 = sand.u32 %s52, 1
        %s132 = scalar_lea.sflag [#allocation4], %s131
        %s133 = sand.u32 %s52, 1
        %s134 = smul.addr %s133, 16
        %s135 = scalar_lea.vmem [#allocation5], %s134
        %s136 = smul.u32 16, %s18
        %s137 = smul.u32 2, %s18
        %v138 = vld [vmem:[%s117] sm:$0xff]
        %v139 = vld [vmem:[%s117 + $0x8] sm:$0xff]
        %v140 = vld [vmem:[%s117 + $0x10] sm:$0xff]
        %v141 = vld [vmem:[%s117 + $0x18] sm:$0xff]
        %v142 = vld [vmem:[%s117 + $0x20] sm:$0xff]
        %v143 = vld [vmem:[%s117 + $0x28] sm:$0xff]
        %v144 = vld [vmem:[%s117 + $0x30] sm:$0xff]
        %v145 = vld [vmem:[%s117 + $0x38] sm:$0xff]
        %v146 = vld [vmem:[%s117 + $0x40] sm:$0xff]
        %v147 = vld [vmem:[%s117 + $0x48] sm:$0xff]
        %v148 = vld [vmem:[%s117 + $0x50] sm:$0xff]
        %v149 = vld [vmem:[%s117 + $0x58] sm:$0xff]
        %v150 = vld [vmem:[%s117 + $0x60] sm:$0xff]
        %v151 = vld [vmem:[%s117 + $0x68] sm:$0xff]
        %v152 = vld [vmem:[%s117 + $0x70] sm:$0xff]
        %v153 = vld [vmem:[%s117 + $0x78] sm:$0xff]
        %v154 = vld [vmem:[%s117 + $0x80] sm:$0xff]
        %v155 = vld [vmem:[%s117 + $0x88] sm:$0xff]
        %v156 = vld [vmem:[%s117 + $0x90] sm:$0xff]
        %v157 = vld [vmem:[%s117 + $0x98] sm:$0xff]
        %v158 = vld [vmem:[%s117 + $0xa0] sm:$0xff]
        %v159 = vld [vmem:[%s117 + $0xa8] sm:$0xff]
        %v160 = vld [vmem:[%s117 + $0xb0] sm:$0xff]
        %v161 = vld [vmem:[%s117 + $0xb8] sm:$0xff]
        %v162 = vld [vmem:[%s117 + $0xc0] sm:$0xff]
        %v163 = vld [vmem:[%s117 + $0xc8] sm:$0xff]
        %v164 = vld [vmem:[%s117 + $0xd0] sm:$0xff]
        %v165 = vld [vmem:[%s117 + $0xd8] sm:$0xff]
        %v166 = vld [vmem:[%s117 + $0xe0] sm:$0xff]
        %v167 = vld [vmem:[%s117 + $0xe8] sm:$0xff]
        %v168 = vld [vmem:[%s117 + $0xf0] sm:$0xff]
        %v169 = vld [vmem:[%s117 + $0xf8] sm:$0xff]
        %v170 = vld [vmem:[%s117 + $0x100] sm:$0xff]
        %v171 = vld [vmem:[%s117 + $0x108] sm:$0xff]
        %v172 = vld [vmem:[%s117 + $0x110] sm:$0xff]
        %v173 = vld [vmem:[%s117 + $0x118] sm:$0xff]
        %v174 = vld [vmem:[%s117 + $0x120] sm:$0xff]
        %v175 = vld [vmem:[%s117 + $0x128] sm:$0xff]
        %v176 = vld [vmem:[%s117 + $0x130] sm:$0xff]
        %v177 = vld [vmem:[%s117 + $0x138] sm:$0xff]
        %v178 = vld [vmem:[%s117 + $0x140] sm:$0xff]
        %v179 = vld [vmem:[%s117 + $0x148] sm:$0xff]
        %v180 = vld [vmem:[%s117 + $0x150] sm:$0xff]
        %v181 = vld [vmem:[%s117 + $0x158] sm:$0xff]
        %v182 = vld [vmem:[%s117 + $0x160] sm:$0xff]
        %v183 = vld [vmem:[%s117 + $0x168] sm:$0xff]
        %v184 = vld [vmem:[%s117 + $0x170] sm:$0xff]
        %v185 = vld [vmem:[%s117 + $0x178] sm:$0xff]
        %v186 = vld [vmem:[%s117 + $0x180] sm:$0xff]
        %v187 = vld [vmem:[%s117 + $0x188] sm:$0xff]
        %v188 = vld [vmem:[%s117 + $0x190] sm:$0xff]
        %v189 = vld [vmem:[%s117 + $0x198] sm:$0xff]
        %v190 = vld [vmem:[%s117 + $0x1a0] sm:$0xff]
        %v191 = vld [vmem:[%s117 + $0x1a8] sm:$0xff]
        %v192 = vld [vmem:[%s117 + $0x1b0] sm:$0xff]
        %v193 = vld [vmem:[%s117 + $0x1b8] sm:$0xff]
        %v194 = vld [vmem:[%s117 + $0x1c0] sm:$0xff]
        %v195 = vld [vmem:[%s117 + $0x1c8] sm:$0xff]
        %v196 = vld [vmem:[%s117 + $0x1d0] sm:$0xff]
        %v197 = vld [vmem:[%s117 + $0x1d8] sm:$0xff]
        %v198 = vld [vmem:[%s117 + $0x1e0] sm:$0xff]
        %v199 = vld [vmem:[%s117 + $0x1e8] sm:$0xff]
        %v200 = vld [vmem:[%s117 + $0x1f0] sm:$0xff]
        %v201 = vld [vmem:[%s117 + $0x1f8] sm:$0xff]
        %v202 = vadd.f32 %v138, %v139
        %v203 = vadd.f32 %v202, %v140
        %v204 = vadd.f32 %v203, %v141
        %v205 = vrot.slane %v204, 4
        %v206 = vadd.f32 %v204, %v205
        %v207 = vrot.slane %v206, 2
        %v208 = vadd.f32 %v206, %v207
        %v209 = vrot.slane %v208, 1
        %v210 = vadd.f32 %v208, %v209
        %v211 = vadd.f32 %v142, %v143
        %v212 = vadd.f32 %v211, %v144
        %v213 = vadd.f32 %v212, %v145
        %v214 = vrot.slane %v213, 4
        %v215 = vadd.f32 %v213, %v214
        %v216 = vrot.slane %v215, 2
        %v217 = vadd.f32 %v215, %v216
        %v218 = vrot.slane %v217, 1
        %v219 = vadd.f32 %v217, %v218
        %v220 = vadd.f32 %v146, %v147
        %v221 = vadd.f32 %v220, %v148
        %v222 = vadd.f32 %v221, %v149
        %v223 = vrot.slane %v222, 4
        %v224 = vadd.f32 %v222, %v223
        %v225 = vrot.slane %v224, 2
        %v226 = vadd.f32 %v224, %v225
        %v227 = vrot.slane %v226, 1
        %v228 = vadd.f32 %v226, %v227
        %v229 = vadd.f32 %v150, %v151
        %v230 = vadd.f32 %v229, %v152
        %v231 = vadd.f32 %v230, %v153
        %v232 = vrot.slane %v231, 4
        %v233 = vadd.f32 %v231, %v232
        %v234 = vrot.slane %v233, 2
        %v235 = vadd.f32 %v233, %v234
        %v236 = vrot.slane %v235, 1
        %v237 = vadd.f32 %v235, %v236
        %v238 = vadd.f32 %v154, %v155
        %v239 = vadd.f32 %v238, %v156
        %v240 = vadd.f32 %v239, %v157
        %v241 = vrot.slane %v240, 4
        %v242 = vadd.f32 %v240, %v241
        %v243 = vrot.slane %v242, 2
        %v244 = vadd.f32 %v242, %v243
        %v245 = vrot.slane %v244, 1
        %v246 = vadd.f32 %v244, %v245
        %v247 = vadd.f32 %v158, %v159
        %v248 = vadd.f32 %v247, %v160
        %v249 = vadd.f32 %v248, %v161
        %v250 = vrot.slane %v249, 4
        %v251 = vadd.f32 %v249, %v250
        %v252 = vrot.slane %v251, 2
        %v253 = vadd.f32 %v251, %v252
        %v254 = vrot.slane %v253, 1
        %v255 = vadd.f32 %v253, %v254
        %v256 = vadd.f32 %v162, %v163
        %v257 = vadd.f32 %v256, %v164
        %v258 = vadd.f32 %v257, %v165
        %v259 = vrot.slane %v258, 4
        %v260 = vadd.f32 %v258, %v259
        %v261 = vrot.slane %v260, 2
        %v262 = vadd.f32 %v260, %v261
        %v263 = vrot.slane %v262, 1
        %v264 = vadd.f32 %v262, %v263
        %v265 = vadd.f32 %v166, %v167
        %v266 = vadd.f32 %v265, %v168
        %v267 = vadd.f32 %v266, %v169
        %v268 = vrot.slane %v267, 4
        %v269 = vadd.f32 %v267, %v268
        %v270 = vrot.slane %v269, 2
        %v271 = vadd.f32 %v269, %v270
        %v272 = vrot.slane %v271, 1
        %v273 = vadd.f32 %v271, %v272
        %v274 = vadd.f32 %v170, %v171
        %v275 = vadd.f32 %v274, %v172
        %v276 = vadd.f32 %v275, %v173
        %v277 = vrot.slane %v276, 4
        %v278 = vadd.f32 %v276, %v277
        %v279 = vrot.slane %v278, 2
        %v280 = vadd.f32 %v278, %v279
        %v281 = vrot.slane %v280, 1
        %v282 = vadd.f32 %v280, %v281
        %v283 = vadd.f32 %v174, %v175
        %v284 = vadd.f32 %v283, %v176
        %v285 = vadd.f32 %v284, %v177
        %v286 = vrot.slane %v285, 4
        %v287 = vadd.f32 %v285, %v286
        %v288 = vrot.slane %v287, 2
        %v289 = vadd.f32 %v287, %v288
        %v290 = vrot.slane %v289, 1
        %v291 = vadd.f32 %v289, %v290
        %v292 = vadd.f32 %v178, %v179
        %v293 = vadd.f32 %v292, %v180
        %v294 = vadd.f32 %v293, %v181
        %v295 = vrot.slane %v294, 4
        %v296 = vadd.f32 %v294, %v295
        %v297 = vrot.slane %v296, 2
        %v298 = vadd.f32 %v296, %v297
        %v299 = vrot.slane %v298, 1
        %v300 = vadd.f32 %v298, %v299
        %v301 = vadd.f32 %v182, %v183
        %v302 = vadd.f32 %v301, %v184
        %v303 = vadd.f32 %v302, %v185
        %v304 = vrot.slane %v303, 4
        %v305 = vadd.f32 %v303, %v304
        %v306 = vrot.slane %v305, 2
        %v307 = vadd.f32 %v305, %v306
        %v308 = vrot.slane %v307, 1
        %v309 = vadd.f32 %v307, %v308
        %v310 = vadd.f32 %v186, %v187
        %v311 = vadd.f32 %v310, %v188
        %v312 = vadd.f32 %v311, %v189
        %v313 = vrot.slane %v312, 4
        %v314 = vadd.f32 %v312, %v313
        %v315 = vrot.slane %v314, 2
        %v316 = vadd.f32 %v314, %v315
        %v317 = vrot.slane %v316, 1
        %v318 = vadd.f32 %v316, %v317
        %v319 = vadd.f32 %v190, %v191
        %v320 = vadd.f32 %v319, %v192
        %v321 = vadd.f32 %v320, %v193
        %v322 = vrot.slane %v321, 4
        %v323 = vadd.f32 %v321, %v322
        %v324 = vrot.slane %v323, 2
        %v325 = vadd.f32 %v323, %v324
        %v326 = vrot.slane %v325, 1
        %v327 = vadd.f32 %v325, %v326
        %v328 = vadd.f32 %v194, %v195
        %v329 = vadd.f32 %v328, %v196
        %v330 = vadd.f32 %v329, %v197
        %v331 = vrot.slane %v330, 4
        %v332 = vadd.f32 %v330, %v331
        %v333 = vrot.slane %v332, 2
        %v334 = vadd.f32 %v332, %v333
        %v335 = vrot.slane %v334, 1
        %v336 = vadd.f32 %v334, %v335
        %v337 = vadd.f32 %v198, %v199
        %v338 = vadd.f32 %v337, %v200
        %v339 = vadd.f32 %v338, %v201
        %v340 = vrot.slane %v339, 4
        %v341 = vadd.f32 %v339, %v340
        %v342 = vrot.slane %v341, 2
        %v343 = vadd.f32 %v341, %v342
        %v344 = vrot.slane %v343, 1
        %v345 = vadd.f32 %v343, %v344
        %vm362 = vcmask 1041409
        %v363 = vsel %vm362, %v219, %v210
        %vm364 = vcmask 1042434
        %v365 = vsel %vm364, %v228, %v363
        %vm366 = vcmask 1043459
        %v367 = vsel %vm366, %v237, %v365
        %vm368 = vcmask 1044484
        %v369 = vsel %vm368, %v246, %v367
        %vm370 = vcmask 1045509
        %v371 = vsel %vm370, %v255, %v369
        %vm372 = vcmask 1046534
        %v373 = vsel %vm372, %v264, %v371
        %vm374 = vcmask 1047559
        %v375 = vsel %vm374, %v273, %v373
        %v376 = vsel %vm362, %v291, %v282
        %v377 = vsel %vm364, %v300, %v376
        %v378 = vsel %vm366, %v309, %v377
        %v379 = vsel %vm368, %v318, %v378
        %v380 = vsel %vm370, %v327, %v379
        %v381 = vsel %vm372, %v336, %v380
        %v382 = vsel %vm374, %v345, %v381
        %385 = vst [vmem:[%s135] sm:$0xff] %v375
        %386 = vst [vmem:[%s135 + $0x8] sm:$0xff] %v382
        %s387 = sand.u32 %s52, 1
        %s388 = scalar_lea.sflag [#allocation4], %s387
        %s389 = sand.u32 %s52, 1
        %s390 = smul.addr %s389, 16
        %s391 = scalar_lea.vmem [#allocation5], %s390
        // Predicated region
        $region29: #{tpu_custom_call.1} parent=23 // pred_check
          %p392 = pneg %p62
        $region30: #{tpu_custom_call.1} parent=23 // pred_check_branch
          %394 = sbr.rel (%p392) target = $region32
        $region31: #{tpu_custom_call.1} parent=23 // pred_region
          %s395 = smul.u32 2, %s18
          %s397 = ssub.s32 256, 256
          %398 = vsyncadd %s388, %s397
          %s399 = smul.addr %s395, 128
          %s400 = scalar_lea.hbm %s1, %s399
          %s401 = sshll.u32 %s391, 4
          %s402 = int_to_ptr.vmem [resolvable:$true] %s401
          %407 = dma.vmem_to_hbm [thread:$0]  %s402, 256, %s400, %s388, 128, 128, 8
        $region32: #{tpu_custom_call.1} parent=23 // pred_fallthru
          _
      $region24: #{tpu_custom_call.1} parent=5 // pred_fallthru
        _
      %p408 = scmp.le.s32.totalorder 2, %s13
      // Predicated region
      $region33: #{tpu_custom_call.1} parent=5 // pred_check
        %p409 = pneg %p408
      $region34: #{tpu_custom_call.1} parent=5 // pred_check_branch
        %411 = sbr.rel (%p409) target = $region36
      $region35: #{tpu_custom_call.1} parent=5 // pred_region
        %s412 = ssub.s32 %s13, 2
        // Predicated region
        $region37: #{tpu_custom_call.1} parent=35 // pred_check
          %p413 = pneg %p68
        $region38: #{tpu_custom_call.1} parent=35 // pred_check_branch
          %415 = sbr.rel (%p413) target = $region40
        $region39: #{tpu_custom_call.1} parent=35 // pred_region
          %s416 = sand.u32 %s53, 1
          %s417 = scalar_lea.sflag [#allocation4], %s416
          %s418 = sand.u32 %s53, 1
          %s419 = smul.addr %s418, 16
          %s420 = scalar_lea.vmem [#allocation5], %s419
          %421 = dma.done %s417, 256
        $region40: #{tpu_custom_call.1} parent=35 // pred_fallthru
          _
      $region36: #{tpu_custom_call.1} parent=5 // pred_fallthru
        _
    $region6: #{tpu_custom_call.1} parent=1 // loop_footer
      %s17 = sadd.s32 1, %s13
    $region7: #{tpu_custom_call.1} parent=1 // loop_footer_branch
      %12 = sbr.rel target = $region3
    $region8: #{tpu_custom_call.1} parent=1 // loop_exit
      _
    %422 = vsyncpa [#allocation3], 1
    %s423 = scalar_lea.sflag [#allocation3], 1
    %424 = vsyncpa %s423, 1
    %425 = vsyncpa [#allocation4], 1
    %s426 = scalar_lea.sflag [#allocation4], 1
    %427 = vsyncpa %s426, 1

</llo_original>
